<compile_context>
chip_gen: v5e
topology: v5e:2x2
jax: 0.10.0
libtpu: 0.0.40
codegen_flags: <defaults>
</compile_context>

<pallas_src>
import functools

import jax
import jax.numpy as jnp
from jax.experimental import pallas as pl
from jax.experimental.pallas import tpu as pltpu


def _mlp_kernel(x_ref, w1_ref, b1_ref, w2_ref, b2_ref, w3_ref, b3_ref, o_ref):
    # x_ref: (4, Bt) f32, batch on lanes.
    x = x_ref[...]
    w1 = w1_ref[...]                                      # (128, 4) f32

    # ---- fc1 + ReLU: K=4 -> 4 VPU FMAs (outer-product accumulation). ----
    h1 = w1[:, 0:1] * x[0:1, :]                           # (128, Bt) f32
    for k in range(1, 4):
        h1 = h1 + w1[:, k:k + 1] * x[k:k + 1, :]
    h1 = jnp.maximum(h1 + b1_ref[...], 0.0)

    # ---- fc2 + ReLU: MXU, bf16 operands, f32 accumulation. ----
    h2 = jnp.dot(w2_ref[...], h1.astype(jnp.bfloat16),
                 preferred_element_type=jnp.float32)      # (128, Bt) f32
    h2 = jnp.maximum(h2 + b2_ref[...], 0.0)

    # ---- fc3: MXU, bf16 operands, f32 accumulation (no activation). ----
    out = jnp.dot(w3_ref[...], h2.astype(jnp.bfloat16),
                  preferred_element_type=jnp.float32)     # (2, Bt) f32
    o_ref[...] = (out + b3_ref[...]).astype(o_ref.dtype)


@functools.partial(jax.jit, static_argnames=("b_tile",))
def net_forward(x, params, *, b_tile=256):
    """x: (B, 4) float32.  params: PyTorch-layout w{1,2,3}: (out, in), b{1,2,3}: (out,)."""
    w1, b1 = params["w1"], params["b1"]
    w2, b2 = params["w2"], params["b2"]
    w3, b3 = params["w3"], params["b3"]

    B = x.shape[0]
    in_dim = w1.shape[1]        # 4
    hid = w1.shape[0]           # 128
    out_dim = w3.shape[0]       # 2

    # Pad the batch up to a multiple of the tile and put it on the lane axis.
    n_tiles = -(-B // b_tile)
    Bp = n_tiles * b_tile
    xT = jnp.pad(x.astype(jnp.float32).T, ((0, 0), (0, Bp - B)))   # (4, Bp)

    # MXU operands pre-cast to bf16 (f32 accumulation in-kernel); rest f32.
    w1c = w1.astype(jnp.float32)
    w2c = w2.astype(jnp.bfloat16)
    w3c = w3.astype(jnp.bfloat16)
    b1c = b1.reshape(hid, 1).astype(jnp.float32)
    b2c = b2.reshape(hid, 1).astype(jnp.float32)
    b3c = b3.reshape(out_dim, 1).astype(jnp.float32)

    def resident(shape):
        # Constant index_map -> block stays VMEM-resident across the grid.
        return pl.BlockSpec(shape, lambda i: (0, 0))

    outT = pl.pallas_call(
        _mlp_kernel,
        out_shape=jax.ShapeDtypeStruct((out_dim, Bp), jnp.float32),
        grid=(n_tiles,),
        in_specs=[
            pl.BlockSpec((in_dim, b_tile), lambda i: (0, i)),  # x tile (streamed)
            resident((hid, in_dim)),      # w1
            resident((hid, 1)),           # b1
            resident((hid, hid)),         # w2
            resident((hid, 1)),           # b2
            resident((out_dim, hid)),     # w3
            resident((out_dim, 1)),       # b3
        ],
        out_specs=pl.BlockSpec((out_dim, b_tile), lambda i: (0, i)),
        compiler_params=pltpu.CompilerParams(
            dimension_semantics=("parallel",),
        ),
    )(xT, w1c, b1c, w2c, b2c, w3c, b3c)

    # Back to PyTorch layout: (B, out_dim).
    return outT[:, :B].T


def init_params(key):
    """Deterministic synthetic params, PyTorch nn.Linear-style uniform init."""
    dims = [(4, 128), (128, 128), (128, 2)]
    params = {}
    for i, (fan_in, fan_out) in enumerate(dims, start=1):
        key, kw, kb = jax.random.split(key, 3)
        bound = 1.0 / (fan_in ** 0.5)
        # PyTorch layout: weight (out_features, in_features), bias (out_features,)
        params[f"w{i}"] = jax.random.uniform(
            kw, (fan_out, fan_in), jnp.float32, -bound, bound)
        params[f"b{i}"] = jax.random.uniform(
            kb, (fan_out,), jnp.float32, -bound, bound)
    return params


if __name__ == "__main__":
    key = jax.random.PRNGKey(0)
    pkey, xkey = jax.random.split(key)
    params = init_params(pkey)

    # CartPole-style observation: batch of 2, 4 features each.
    x = jax.random.normal(xkey, (2, 4), dtype=jnp.float32)

    out = net_forward(x, params)
    out = jax.block_until_ready(out)

    # Plain-JAX f32 reference (PyTorch semantics: y = x @ W.T + b).
    h = jnp.maximum(x @ params["w1"].T + params["b1"], 0.0)
    h = jnp.maximum(h @ params["w2"].T + params["b2"], 0.0)
    ref = h @ params["w3"].T + params["b3"]

    assert out.shape == (2, 2)
    # bf16 MXU operands with f32 accumulation -> loose-but-tight tolerance.
    assert jnp.allclose(out, ref, atol=3e-2, rtol=3e-2), (out, ref)

    print("KERNEL_OK")
</pallas_src>

<mosaic_0001>
module attributes {stable_mosaic.version = 11 : i64} {
  func.func @_mlp_kernel(%arg0: i32, %arg1: memref<4x256xf32, #tpu.memory_space<vmem>>, %arg2: memref<128x4xf32, #tpu.memory_space<vmem>>, %arg3: memref<128x1xf32, #tpu.memory_space<vmem>>, %arg4: memref<128x128xbf16, #tpu.memory_space<vmem>>, %arg5: memref<128x1xf32, #tpu.memory_space<vmem>>, %arg6: memref<2x128xbf16, #tpu.memory_space<vmem>>, %arg7: memref<2x1xf32, #tpu.memory_space<vmem>>, %arg8: memref<2x256xf32, #tpu.memory_space<vmem>>) attributes {dimension_semantics = [#tpu.dimension_semantics<parallel>], iteration_bounds = array<i64: 1>, scalar_prefetch = 0 : i64, scratch_operands = 0 : i64, tpu.core_type = #tpu.core_type<tc>, window_params = [{transform_indices = @transform_0, window_bounds = array<i64: 4, 256>}, {pipeline_mode = #tpu.pipeline_mode<synchronous>, transform_indices = @transform_1, window_bounds = array<i64: 128, 4>}, {pipeline_mode = #tpu.pipeline_mode<synchronous>, transform_indices = @transform_2, window_bounds = array<i64: 128, 1>}, {pipeline_mode = #tpu.pipeline_mode<synchronous>, transform_indices = @transform_3, window_bounds = array<i64: 128, 128>}, {pipeline_mode = #tpu.pipeline_mode<synchronous>, transform_indices = @transform_4, window_bounds = array<i64: 128, 1>}, {pipeline_mode = #tpu.pipeline_mode<synchronous>, transform_indices = @transform_5, window_bounds = array<i64: 2, 128>}, {pipeline_mode = #tpu.pipeline_mode<synchronous>, transform_indices = @transform_6, window_bounds = array<i64: 2, 1>}, {transform_indices = @transform_7, window_bounds = array<i64: 2, 256>}]} {
    %c0 = arith.constant 0 : index
    %c0_0 = arith.constant 0 : index
    %0 = vector.load %arg1[%c0, %c0_0] : memref<4x256xf32, #tpu.memory_space<vmem>>, vector<4x256xf32>
    %c0_1 = arith.constant 0 : index
    %c0_2 = arith.constant 0 : index
    %1 = vector.load %arg2[%c0_1, %c0_2] : memref<128x4xf32, #tpu.memory_space<vmem>>, vector<128x4xf32>
    %2 = vector.extract_strided_slice %1 {offsets = [0, 0], sizes = [128, 1], strides = [1, 1]} : vector<128x4xf32> to vector<128x1xf32>
    %3 = vector.extract_strided_slice %0 {offsets = [0, 0], sizes = [1, 256], strides = [1, 1]} : vector<4x256xf32> to vector<1x256xf32>
    %4 = vector.broadcast %2 : vector<128x1xf32> to vector<128x256xf32>
    %5 = vector.broadcast %3 : vector<1x256xf32> to vector<128x256xf32>
    %6 = arith.mulf %4, %5 : vector<128x256xf32>
    %7 = vector.extract_strided_slice %1 {offsets = [0, 1], sizes = [128, 1], strides = [1, 1]} : vector<128x4xf32> to vector<128x1xf32>
    %8 = vector.extract_strided_slice %0 {offsets = [1, 0], sizes = [1, 256], strides = [1, 1]} : vector<4x256xf32> to vector<1x256xf32>
    %9 = vector.broadcast %7 : vector<128x1xf32> to vector<128x256xf32>
    %10 = vector.broadcast %8 : vector<1x256xf32> to vector<128x256xf32>
    %11 = arith.mulf %9, %10 : vector<128x256xf32>
    %12 = arith.addf %6, %11 : vector<128x256xf32>
    %13 = vector.extract_strided_slice %1 {offsets = [0, 2], sizes = [128, 1], strides = [1, 1]} : vector<128x4xf32> to vector<128x1xf32>
    %14 = vector.extract_strided_slice %0 {offsets = [2, 0], sizes = [1, 256], strides = [1, 1]} : vector<4x256xf32> to vector<1x256xf32>
    %15 = vector.broadcast %13 : vector<128x1xf32> to vector<128x256xf32>
    %16 = vector.broadcast %14 : vector<1x256xf32> to vector<128x256xf32>
    %17 = arith.mulf %15, %16 : vector<128x256xf32>
    %18 = arith.addf %12, %17 : vector<128x256xf32>
    %19 = vector.extract_strided_slice %1 {offsets = [0, 3], sizes = [128, 1], strides = [1, 1]} : vector<128x4xf32> to vector<128x1xf32>
    %20 = vector.extract_strided_slice %0 {offsets = [3, 0], sizes = [1, 256], strides = [1, 1]} : vector<4x256xf32> to vector<1x256xf32>
    %21 = vector.broadcast %19 : vector<128x1xf32> to vector<128x256xf32>
    %22 = vector.broadcast %20 : vector<1x256xf32> to vector<128x256xf32>
    %23 = arith.mulf %21, %22 : vector<128x256xf32>
    %24 = arith.addf %18, %23 : vector<128x256xf32>
    %c0_3 = arith.constant 0 : index
    %c0_4 = arith.constant 0 : index
    %25 = vector.load %arg3[%c0_3, %c0_4] : memref<128x1xf32, #tpu.memory_space<vmem>>, vector<128x1xf32>
    %26 = vector.broadcast %25 : vector<128x1xf32> to vector<128x256xf32>
    %27 = arith.addf %24, %26 : vector<128x256xf32>
    %cst = arith.constant 0.000000e+00 : f32
    %28 = vector.broadcast %cst : f32 to vector<128x256xf32>
    %29 = arith.maximumf %27, %28 : vector<128x256xf32>
    %c0_5 = arith.constant 0 : index
    %c0_6 = arith.constant 0 : index
    %30 = vector.load %arg4[%c0_5, %c0_6] : memref<128x128xbf16, #tpu.memory_space<vmem>>, vector<128x128xbf16>
    %31 = arith.truncf %29 : vector<128x256xf32> to vector<128x256xbf16>
    %cst_7 = arith.constant dense<0.000000e+00> : vector<128x256xf32>
    %32 = tpu.matmul %30, %31, %cst_7 {dimension_numbers = #tpu.dot_dimension_numbers<[1], [0], [0], [1], [0, 0, 1, 1], [], []>} : vector<128x128xbf16>, vector<128x256xbf16>, vector<128x256xf32> -> vector<128x256xf32>
    %c0_8 = arith.constant 0 : index
    %c0_9 = arith.constant 0 : index
    %33 = vector.load %arg5[%c0_8, %c0_9] : memref<128x1xf32, #tpu.memory_space<vmem>>, vector<128x1xf32>
    %34 = vector.broadcast %33 : vector<128x1xf32> to vector<128x256xf32>
    %35 = arith.addf %32, %34 : vector<128x256xf32>
    %cst_10 = arith.constant 0.000000e+00 : f32
    %36 = vector.broadcast %cst_10 : f32 to vector<128x256xf32>
    %37 = arith.maximumf %35, %36 : vector<128x256xf32>
    %c0_11 = arith.constant 0 : index
    %c0_12 = arith.constant 0 : index
    %38 = vector.load %arg6[%c0_11, %c0_12] : memref<2x128xbf16, #tpu.memory_space<vmem>>, vector<2x128xbf16>
    %39 = arith.truncf %37 : vector<128x256xf32> to vector<128x256xbf16>
    %cst_13 = arith.constant dense<0.000000e+00> : vector<2x256xf32>
    %40 = tpu.matmul %38, %39, %cst_13 {dimension_numbers = #tpu.dot_dimension_numbers<[1], [0], [0], [1], [0, 0, 1, 1], [], []>} : vector<2x128xbf16>, vector<128x256xbf16>, vector<2x256xf32> -> vector<2x256xf32>
    %c0_14 = arith.constant 0 : index
    %c0_15 = arith.constant 0 : index
    %41 = vector.load %arg7[%c0_14, %c0_15] : memref<2x1xf32, #tpu.memory_space<vmem>>, vector<2x1xf32>
    %42 = vector.broadcast %41 : vector<2x1xf32> to vector<2x256xf32>
    %43 = arith.addf %40, %42 : vector<2x256xf32>
    %c0_16 = arith.constant 0 : index
    %c0_17 = arith.constant 0 : index
    %44 = vector.load %arg8[%c0_16, %c0_17] : memref<2x256xf32, #tpu.memory_space<vmem>>, vector<2x256xf32>
    tpu.vector_store %arg8[%c0_16, %c0_17], %43 {strides = array<i32>} : memref<2x256xf32, #tpu.memory_space<vmem>>, vector<2x256xf32>,
    return
  }
  func.func @transform_0(%arg0: i32) -> (i32, i32) {
    %c0_i32 = arith.constant 0 : i32
    %c0_i32_0 = arith.constant 0 : i32
    return %c0_i32, %arg0 : i32, i32
  }
  func.func @transform_1(%arg0: i32) -> (i32, i32) {
    %c0_i32 = arith.constant 0 : i32
    %c0_i32_0 = arith.constant 0 : i32
    %c0_i32_1 = arith.constant 0 : i32
    return %c0_i32, %c0_i32_0 : i32, i32
  }
  func.func @transform_2(%arg0: i32) -> (i32, i32) {
    %c0_i32 = arith.constant 0 : i32
    %c0_i32_0 = arith.constant 0 : i32
    %c0_i32_1 = arith.constant 0 : i32
    return %c0_i32, %c0_i32_0 : i32, i32
  }
  func.func @transform_3(%arg0: i32) -> (i32, i32) {
    %c0_i32 = arith.constant 0 : i32
    %c0_i32_0 = arith.constant 0 : i32
    %c0_i32_1 = arith.constant 0 : i32
    return %c0_i32, %c0_i32_0 : i32, i32
  }
  func.func @transform_4(%arg0: i32) -> (i32, i32) {
    %c0_i32 = arith.constant 0 : i32
    %c0_i32_0 = arith.constant 0 : i32
    %c0_i32_1 = arith.constant 0 : i32
    return %c0_i32, %c0_i32_0 : i32, i32
  }
  func.func @transform_5(%arg0: i32) -> (i32, i32) {
    %c0_i32 = arith.constant 0 : i32
    %c0_i32_0 = arith.constant 0 : i32
    %c0_i32_1 = arith.constant 0 : i32
    return %c0_i32, %c0_i32_0 : i32, i32
  }
  func.func @transform_6(%arg0: i32) -> (i32, i32) {
    %c0_i32 = arith.constant 0 : i32
    %c0_i32_0 = arith.constant 0 : i32
    %c0_i32_1 = arith.constant 0 : i32
    return %c0_i32, %c0_i32_0 : i32, i32
  }
  func.func @transform_7(%arg0: i32) -> (i32, i32) {
    %c0_i32 = arith.constant 0 : i32
    %c0_i32_0 = arith.constant 0 : i32
    return %c0_i32, %arg0 : i32, i32
  }
}

</mosaic_0001>

<llo_original>
// kernel: net_forward.1
$region0: #{net_forward.1}
  #allocation0 [shape = 'u32[]', space=smem, size = 0x4, offset = 0x4, fixed_abs, tag = 'smem constant byte address 0x4 - core index']
  #allocation1 [shape = 'u32[72,128]{1,0:T(1,128)}', space=vmem, size = 0x9000, scoped, tag = 'internal scratch']
  %s0 = inlined_call_operand.vmem [shape: f32[4,256], index: 0, kind: input, shape index: {}]
  %s1 = inlined_call_operand.vmem [shape: f32[128,4], index: 1, kind: input, shape index: {}]
  %s2 = inlined_call_operand.vmem [shape: f32[128,1], index: 2, kind: input, shape index: {}]
  %s3 = inlined_call_operand.vmem [shape: bf16[128,128], index: 3, kind: input, shape index: {}]
  %s4 = inlined_call_operand.vmem [shape: f32[128,1], index: 4, kind: input, shape index: {}]
  %s5 = inlined_call_operand.vmem [shape: bf16[2,128], index: 5, kind: input, shape index: {}]
  %s6 = inlined_call_operand.vmem [shape: f32[2,1], index: 6, kind: input, shape index: {}]
  %s7 = inlined_call_operand.vmem [shape: f32[2,256], index: 7, kind: output, shape index: {}]
  %s8 = sld [smem:[#allocation0]]
  $region38: #{net_forward.1} parent=0
    _
  %s10 = ssub.s32 1, %s8
  %s11 = scalar_select 0, %s10, %s8
  // Predicated region
  $region2: #{net_forward.1} parent=0 // pred_check
    _
  $region3: #{net_forward.1} parent=0 // pred_check_branch
    %13 = sbr.rel (0) target = $region5
  $region4: #{net_forward.1} parent=0 // pred_region
    _
  $region5: #{net_forward.1} parent=0 // pred_fallthru
    _
  // Predicated region
  $region6: #{net_forward.1} parent=0 // pred_check
    _
  $region7: #{net_forward.1} parent=0 // pred_check_branch
    %15 = sbr.rel (0) target = $region9
  $region8: #{net_forward.1} parent=0 // pred_region
    _
  $region9: #{net_forward.1} parent=0 // pred_fallthru
    _
  // Predicated region
  $region10: #{net_forward.1} parent=0 // pred_check
    _
  $region11: #{net_forward.1} parent=0 // pred_check_branch
    %17 = sbr.rel (0) target = $region13
  $region12: #{net_forward.1} parent=0 // pred_region
    _
  $region13: #{net_forward.1} parent=0 // pred_fallthru
    _
  // Predicated region
  $region14: #{net_forward.1} parent=0 // pred_check
    _
  $region15: #{net_forward.1} parent=0 // pred_check_branch
    %19 = sbr.rel (0) target = $region17
  $region16: #{net_forward.1} parent=0 // pred_region
    _
  $region17: #{net_forward.1} parent=0 // pred_fallthru
    _
  // Predicated region
  $region18: #{net_forward.1} parent=0 // pred_check
    _
  $region19: #{net_forward.1} parent=0 // pred_check_branch
    %21 = sbr.rel (0) target = $region21
  $region20: #{net_forward.1} parent=0 // pred_region
    _
  $region21: #{net_forward.1} parent=0 // pred_fallthru
    _
  // Predicated region
  $region22: #{net_forward.1} parent=0 // pred_check
    _
  $region23: #{net_forward.1} parent=0 // pred_check_branch
    %23 = sbr.rel (0) target = $region25
  $region24: #{net_forward.1} parent=0 // pred_region
    _
  $region25: #{net_forward.1} parent=0 // pred_fallthru
    _
  // Predicated region
  $region26: #{net_forward.1} parent=0 // pred_check
    _
  $region27: #{net_forward.1} parent=0 // pred_check_branch
    %25 = sbr.rel (0) target = $region29
  $region28: #{net_forward.1} parent=0 // pred_region
    _
  $region29: #{net_forward.1} parent=0 // pred_fallthru
    _
  %v26 = vld [vmem:[%s0] sm:$0xff]
  %v27 = vld [vmem:[%s1] sm:$0xff]
  %v28 = vld [vmem:[%s1 + $0x8] sm:$0xff]
  %v29 = vld [vmem:[%s1 + $0x10] sm:$0xff]
  %v30 = vld [vmem:[%s1 + $0x18] sm:$0xff]
  %v31 = vld [vmem:[%s1 + $0x20] sm:$0xff]
  %v32 = vld [vmem:[%s1 + $0x28] sm:$0xff]
  %v33 = vld [vmem:[%s1 + $0x30] sm:$0xff]
  %v34 = vld [vmem:[%s1 + $0x38] sm:$0xff]
  %v35 = vld [vmem:[%s1 + $0x40] sm:$0xff]
  %v36 = vld [vmem:[%s1 + $0x48] sm:$0xff]
  %v37 = vld [vmem:[%s1 + $0x50] sm:$0xff]
  %v38 = vld [vmem:[%s1 + $0x58] sm:$0xff]
  %v39 = vld [vmem:[%s1 + $0x60] sm:$0xff]
  %v40 = vld [vmem:[%s1 + $0x68] sm:$0xff]
  %v41 = vld [vmem:[%s1 + $0x70] sm:$0xff]
  %v42 = vld [vmem:[%s1 + $0x78] sm:$0xff]
  %44 = vset.pattern.permute.xlu0 0
  %45 = vperm.xlu0 %44, %v27
  %v46 = vpop.permute.xlu0 %45
  %49 = vset.pattern.permute.xlu0 0
  %50 = vperm.xlu0 %49, %v28
  %v51 = vpop.permute.xlu0 %50
  %54 = vset.pattern.permute.xlu0 0
  %55 = vperm.xlu0 %54, %v29
  %v56 = vpop.permute.xlu0 %55
  %59 = vset.pattern.permute.xlu0 0
  %60 = vperm.xlu0 %59, %v30
  %v61 = vpop.permute.xlu0 %60
  %64 = vset.pattern.permute.xlu0 0
  %65 = vperm.xlu0 %64, %v31
  %v66 = vpop.permute.xlu0 %65
  %69 = vset.pattern.permute.xlu0 0
  %70 = vperm.xlu0 %69, %v32
  %v71 = vpop.permute.xlu0 %70
  %74 = vset.pattern.permute.xlu0 0
  %75 = vperm.xlu0 %74, %v33
  %v76 = vpop.permute.xlu0 %75
  %79 = vset.pattern.permute.xlu0 0
  %80 = vperm.xlu0 %79, %v34
  %v81 = vpop.permute.xlu0 %80
  %84 = vset.pattern.permute.xlu0 0
  %85 = vperm.xlu0 %84, %v35
  %v86 = vpop.permute.xlu0 %85
  %89 = vset.pattern.permute.xlu0 0
  %90 = vperm.xlu0 %89, %v36
  %v91 = vpop.permute.xlu0 %90
  %94 = vset.pattern.permute.xlu0 0
  %95 = vperm.xlu0 %94, %v37
  %v96 = vpop.permute.xlu0 %95
  %99 = vset.pattern.permute.xlu0 0
  %100 = vperm.xlu0 %99, %v38
  %v101 = vpop.permute.xlu0 %100
  %104 = vset.pattern.permute.xlu0 0
  %105 = vperm.xlu0 %104, %v39
  %v106 = vpop.permute.xlu0 %105
  %109 = vset.pattern.permute.xlu0 0
  %110 = vperm.xlu0 %109, %v40
  %v111 = vpop.permute.xlu0 %110
  %114 = vset.pattern.permute.xlu0 0
  %115 = vperm.xlu0 %114, %v41
  %v116 = vpop.permute.xlu0 %115
  %119 = vset.pattern.permute.xlu0 0
  %120 = vperm.xlu0 %119, %v42
  %v121 = vpop.permute.xlu0 %120
  %v124 = vperm.slane %v26, 0
  %v125 = vperm.slane %v26, 4
  %v128 = vperm.slane %v124, 0
  %v129 = vperm.slane %v125, 0
  %v130 = vmul.f32 %v46, %v128
  %v131 = vmul.f32 %v46, %v129
  %v132 = vmul.f32 %v51, %v128
  %v133 = vmul.f32 %v51, %v129
  %v134 = vmul.f32 %v56, %v128
  %v135 = vmul.f32 %v56, %v129
  %v136 = vmul.f32 %v61, %v128
  %v137 = vmul.f32 %v61, %v129
  %v138 = vmul.f32 %v66, %v128
  %v139 = vmul.f32 %v66, %v129
  %v140 = vmul.f32 %v71, %v128
  %v141 = vmul.f32 %v71, %v129
  %v142 = vmul.f32 %v76, %v128
  %v143 = vmul.f32 %v76, %v129
  %v144 = vmul.f32 %v81, %v128
  %v145 = vmul.f32 %v81, %v129
  %v146 = vmul.f32 %v86, %v128
  %v147 = vmul.f32 %v86, %v129
  %v148 = vmul.f32 %v91, %v128
  %v149 = vmul.f32 %v91, %v129
  %v150 = vmul.f32 %v96, %v128
  %v151 = vmul.f32 %v96, %v129
  %v152 = vmul.f32 %v101, %v128
  %v153 = vmul.f32 %v101, %v129
  %v154 = vmul.f32 %v106, %v128
  %v155 = vmul.f32 %v106, %v129
  %v156 = vmul.f32 %v111, %v128
  %v157 = vmul.f32 %v111, %v129
  %v158 = vmul.f32 %v116, %v128
  %v159 = vmul.f32 %v116, %v129
  %v160 = vmul.f32 %v121, %v128
  %v161 = vmul.f32 %v121, %v129
  %162 = vset.pattern.permute.xlu0 1
  %163 = vperm.xlu0 %162, %v27
  %v164 = vpop.permute.xlu0 %163
  %166 = vset.pattern.permute.xlu0 1
  %167 = vperm.xlu0 %166, %v28
  %v168 = vpop.permute.xlu0 %167
  %170 = vset.pattern.permute.xlu0 1
  %171 = vperm.xlu0 %170, %v29
  %v172 = vpop.permute.xlu0 %171
  %174 = vset.pattern.permute.xlu0 1
  %175 = vperm.xlu0 %174, %v30
  %v176 = vpop.permute.xlu0 %175
  %178 = vset.pattern.permute.xlu0 1
  %179 = vperm.xlu0 %178, %v31
  %v180 = vpop.permute.xlu0 %179
  %182 = vset.pattern.permute.xlu0 1
  %183 = vperm.xlu0 %182, %v32
  %v184 = vpop.permute.xlu0 %183
  %186 = vset.pattern.permute.xlu0 1
  %187 = vperm.xlu0 %186, %v33
  %v188 = vpop.permute.xlu0 %187
  %190 = vset.pattern.permute.xlu0 1
  %191 = vperm.xlu0 %190, %v34
  %v192 = vpop.permute.xlu0 %191
  %194 = vset.pattern.permute.xlu0 1
  %195 = vperm.xlu0 %194, %v35
  %v196 = vpop.permute.xlu0 %195
  %198 = vset.pattern.permute.xlu0 1
  %199 = vperm.xlu0 %198, %v36
  %v200 = vpop.permute.xlu0 %199
  %202 = vset.pattern.permute.xlu0 1
  %203 = vperm.xlu0 %202, %v37
  %v204 = vpop.permute.xlu0 %203
  %206 = vset.pattern.permute.xlu0 1
  %207 = vperm.xlu0 %206, %v38
  %v208 = vpop.permute.xlu0 %207
  %210 = vset.pattern.permute.xlu0 1
  %211 = vperm.xlu0 %210, %v39
  %v212 = vpop.permute.xlu0 %211
  %214 = vset.pattern.permute.xlu0 1
  %215 = vperm.xlu0 %214, %v40
  %v216 = vpop.permute.xlu0 %215
  %218 = vset.pattern.permute.xlu0 1
  %219 = vperm.xlu0 %218, %v41
  %v220 = vpop.permute.xlu0 %219
  %222 = vset.pattern.permute.xlu0 1
  %223 = vperm.xlu0 %222, %v42
  %v224 = vpop.permute.xlu0 %223
  %v226 = vperm.slane %v26, 1
  %v227 = vperm.slane %v26, 5
  %v230 = vperm.slane %v226, 1
  %v231 = vperm.slane %v227, 1
  %v232 = vmul.f32 %v164, %v230
  %v233 = vmul.f32 %v164, %v231
  %v234 = vmul.f32 %v168, %v230
  %v235 = vmul.f32 %v168, %v231
  %v236 = vmul.f32 %v172, %v230
  %v237 = vmul.f32 %v172, %v231
  %v238 = vmul.f32 %v176, %v230
  %v239 = vmul.f32 %v176, %v231
  %v240 = vmul.f32 %v180, %v230
  %v241 = vmul.f32 %v180, %v231
  %v242 = vmul.f32 %v184, %v230
  %v243 = vmul.f32 %v184, %v231
  %v244 = vmul.f32 %v188, %v230
  %v245 = vmul.f32 %v188, %v231
  %v246 = vmul.f32 %v192, %v230
  %v247 = vmul.f32 %v192, %v231
  %v248 = vmul.f32 %v196, %v230
  %v249 = vmul.f32 %v196, %v231
  %v250 = vmul.f32 %v200, %v230
  %v251 = vmul.f32 %v200, %v231
  %v252 = vmul.f32 %v204, %v230
  %v253 = vmul.f32 %v204, %v231
  %v254 = vmul.f32 %v208, %v230
  %v255 = vmul.f32 %v208, %v231
  %v256 = vmul.f32 %v212, %v230
  %v257 = vmul.f32 %v212, %v231
  %v258 = vmul.f32 %v216, %v230
  %v259 = vmul.f32 %v216, %v231
  %v260 = vmul.f32 %v220, %v230
  %v261 = vmul.f32 %v220, %v231
  %v262 = vmul.f32 %v224, %v230
  %v263 = vmul.f32 %v224, %v231
  %v264 = vadd.f32 %v130, %v232
  %v265 = vadd.f32 %v131, %v233
  %v266 = vadd.f32 %v132, %v234
  %v267 = vadd.f32 %v133, %v235
  %v268 = vadd.f32 %v134, %v236
  %v269 = vadd.f32 %v135, %v237
  %v270 = vadd.f32 %v136, %v238
  %v271 = vadd.f32 %v137, %v239
  %v272 = vadd.f32 %v138, %v240
  %v273 = vadd.f32 %v139, %v241
  %v274 = vadd.f32 %v140, %v242
  %v275 = vadd.f32 %v141, %v243
  %v276 = vadd.f32 %v142, %v244
  %v277 = vadd.f32 %v143, %v245
  %v278 = vadd.f32 %v144, %v246
  %v279 = vadd.f32 %v145, %v247
  %v280 = vadd.f32 %v146, %v248
  %v281 = vadd.f32 %v147, %v249
  %v282 = vadd.f32 %v148, %v250
  %v283 = vadd.f32 %v149, %v251
  %v284 = vadd.f32 %v150, %v252
  %v285 = vadd.f32 %v151, %v253
  %v286 = vadd.f32 %v152, %v254
  %v287 = vadd.f32 %v153, %v255
  %v288 = vadd.f32 %v154, %v256
  %v289 = vadd.f32 %v155, %v257
  %v290 = vadd.f32 %v156, %v258
  %v291 = vadd.f32 %v157, %v259
  %v292 = vadd.f32 %v158, %v260
  %v293 = vadd.f32 %v159, %v261
  %v294 = vadd.f32 %v160, %v262
  %v295 = vadd.f32 %v161, %v263
  %296 = vset.pattern.permute.xlu0 2
  %297 = vperm.xlu0 %296, %v27
  %v298 = vpop.permute.xlu0 %297
  %300 = vset.pattern.permute.xlu0 2
  %301 = vperm.xlu0 %300, %v28
  %v302 = vpop.permute.xlu0 %301
  %304 = vset.pattern.permute.xlu0 2
  %305 = vperm.xlu0 %304, %v29
  %v306 = vpop.permute.xlu0 %305
  %308 = vset.pattern.permute.xlu0 2
  %309 = vperm.xlu0 %308, %v30
  %v310 = vpop.permute.xlu0 %309
  %312 = vset.pattern.permute.xlu0 2
  %313 = vperm.xlu0 %312, %v31
  %v314 = vpop.permute.xlu0 %313
  %316 = vset.pattern.permute.xlu0 2
  %317 = vperm.xlu0 %316, %v32
  %v318 = vpop.permute.xlu0 %317
  %320 = vset.pattern.permute.xlu0 2
  %321 = vperm.xlu0 %320, %v33
  %v322 = vpop.permute.xlu0 %321
  %324 = vset.pattern.permute.xlu0 2
  %325 = vperm.xlu0 %324, %v34
  %v326 = vpop.permute.xlu0 %325
  %328 = vset.pattern.permute.xlu0 2
  %329 = vperm.xlu0 %328, %v35
  %v330 = vpop.permute.xlu0 %329
  %332 = vset.pattern.permute.xlu0 2
  %333 = vperm.xlu0 %332, %v36
  %v334 = vpop.permute.xlu0 %333
  %336 = vset.pattern.permute.xlu0 2
  %337 = vperm.xlu0 %336, %v37
  %v338 = vpop.permute.xlu0 %337
  %340 = vset.pattern.permute.xlu0 2
  %341 = vperm.xlu0 %340, %v38
  %v342 = vpop.permute.xlu0 %341
  %344 = vset.pattern.permute.xlu0 2
  %345 = vperm.xlu0 %344, %v39
  %v346 = vpop.permute.xlu0 %345
  %348 = vset.pattern.permute.xlu0 2
  %349 = vperm.xlu0 %348, %v40
  %v350 = vpop.permute.xlu0 %349
  %352 = vset.pattern.permute.xlu0 2
  %353 = vperm.xlu0 %352, %v41
  %v354 = vpop.permute.xlu0 %353
  %356 = vset.pattern.permute.xlu0 2
  %357 = vperm.xlu0 %356, %v42
  %v358 = vpop.permute.xlu0 %357
  %v360 = vperm.slane %v26, 2
  %v361 = vperm.slane %v26, 6
  %v364 = vperm.slane %v360, 2
  %v365 = vperm.slane %v361, 2
  %v366 = vmul.f32 %v298, %v364
  %v367 = vmul.f32 %v298, %v365
  %v368 = vmul.f32 %v302, %v364
  %v369 = vmul.f32 %v302, %v365
  %v370 = vmul.f32 %v306, %v364
  %v371 = vmul.f32 %v306, %v365
  %v372 = vmul.f32 %v310, %v364
  %v373 = vmul.f32 %v310, %v365
  %v374 = vmul.f32 %v314, %v364
  %v375 = vmul.f32 %v314, %v365
  %v376 = vmul.f32 %v318, %v364
  %v377 = vmul.f32 %v318, %v365
  %v378 = vmul.f32 %v322, %v364
  %v379 = vmul.f32 %v322, %v365
  %v380 = vmul.f32 %v326, %v364
  %v381 = vmul.f32 %v326, %v365
  %v382 = vmul.f32 %v330, %v364
  %v383 = vmul.f32 %v330, %v365
  %v384 = vmul.f32 %v334, %v364
  %v385 = vmul.f32 %v334, %v365
  %v386 = vmul.f32 %v338, %v364
  %v387 = vmul.f32 %v338, %v365
  %v388 = vmul.f32 %v342, %v364
  %v389 = vmul.f32 %v342, %v365
  %v390 = vmul.f32 %v346, %v364
  %v391 = vmul.f32 %v346, %v365
  %v392 = vmul.f32 %v350, %v364
  %v393 = vmul.f32 %v350, %v365
  %v394 = vmul.f32 %v354, %v364
  %v395 = vmul.f32 %v354, %v365
  %v396 = vmul.f32 %v358, %v364
  %v397 = vmul.f32 %v358, %v365
  %v398 = vadd.f32 %v264, %v366
  %v399 = vadd.f32 %v265, %v367
  %v400 = vadd.f32 %v266, %v368
  %v401 = vadd.f32 %v267, %v369
  %v402 = vadd.f32 %v268, %v370
  %v403 = vadd.f32 %v269, %v371
  %v404 = vadd.f32 %v270, %v372
  %v405 = vadd.f32 %v271, %v373
  %v406 = vadd.f32 %v272, %v374
  %v407 = vadd.f32 %v273, %v375
  %v408 = vadd.f32 %v274, %v376
  %v409 = vadd.f32 %v275, %v377
  %v410 = vadd.f32 %v276, %v378
  %v411 = vadd.f32 %v277, %v379
  %v412 = vadd.f32 %v278, %v380
  %v413 = vadd.f32 %v279, %v381
  %v414 = vadd.f32 %v280, %v382
  %v415 = vadd.f32 %v281, %v383
  %v416 = vadd.f32 %v282, %v384
  %v417 = vadd.f32 %v283, %v385
  %v418 = vadd.f32 %v284, %v386
  %v419 = vadd.f32 %v285, %v387
  %v420 = vadd.f32 %v286, %v388
  %v421 = vadd.f32 %v287, %v389
  %v422 = vadd.f32 %v288, %v390
  %v423 = vadd.f32 %v289, %v391
  %v424 = vadd.f32 %v290, %v392
  %v425 = vadd.f32 %v291, %v393
  %v426 = vadd.f32 %v292, %v394
  %v427 = vadd.f32 %v293, %v395
  %v428 = vadd.f32 %v294, %v396
  %v429 = vadd.f32 %v295, %v397
  %430 = vset.pattern.permute.xlu0 3
  %431 = vperm.xlu0 %430, %v27
  %v432 = vpop.permute.xlu0 %431
  %434 = vset.pattern.permute.xlu0 3
  %435 = vperm.xlu0 %434, %v28
  %v436 = vpop.permute.xlu0 %435
  %438 = vset.pattern.permute.xlu0 3
  %439 = vperm.xlu0 %438, %v29
  %v440 = vpop.permute.xlu0 %439
  %442 = vset.pattern.permute.xlu0 3
  %443 = vperm.xlu0 %442, %v30
  %v444 = vpop.permute.xlu0 %443
  %446 = vset.pattern.permute.xlu0 3
  %447 = vperm.xlu0 %446, %v31
  %v448 = vpop.permute.xlu0 %447
  %450 = vset.pattern.permute.xlu0 3
  %451 = vperm.xlu0 %450, %v32
  %v452 = vpop.permute.xlu0 %451
  %454 = vset.pattern.permute.xlu0 3
  %455 = vperm.xlu0 %454, %v33
  %v456 = vpop.permute.xlu0 %455
  %458 = vset.pattern.permute.xlu0 3
  %459 = vperm.xlu0 %458, %v34
  %v460 = vpop.permute.xlu0 %459
  %462 = vset.pattern.permute.xlu0 3
  %463 = vperm.xlu0 %462, %v35
  %v464 = vpop.permute.xlu0 %463
  %466 = vset.pattern.permute.xlu0 3
  %467 = vperm.xlu0 %466, %v36
  %v468 = vpop.permute.xlu0 %467
  %470 = vset.pattern.permute.xlu0 3
  %471 = vperm.xlu0 %470, %v37
  %v472 = vpop.permute.xlu0 %471
  %474 = vset.pattern.permute.xlu0 3
  %475 = vperm.xlu0 %474, %v38
  %v476 = vpop.permute.xlu0 %475
  %478 = vset.pattern.permute.xlu0 3
  %479 = vperm.xlu0 %478, %v39
  %v480 = vpop.permute.xlu0 %479
  %482 = vset.pattern.permute.xlu0 3
  %483 = vperm.xlu0 %482, %v40
  %v484 = vpop.permute.xlu0 %483
  %486 = vset.pattern.permute.xlu0 3
  %487 = vperm.xlu0 %486, %v41
  %v488 = vpop.permute.xlu0 %487
  %490 = vset.pattern.permute.xlu0 3
  %491 = vperm.xlu0 %490, %v42
  %v492 = vpop.permute.xlu0 %491
  %v494 = vperm.slane %v26, 3
  %v495 = vperm.slane %v26, 7
  %v498 = vperm.slane %v494, 3
  %v499 = vperm.slane %v495, 3
  %v500 = vmul.f32 %v432, %v498
  %v501 = vmul.f32 %v432, %v499
  %v502 = vmul.f32 %v436, %v498
  %v503 = vmul.f32 %v436, %v499
  %v504 = vmul.f32 %v440, %v498
  %v505 = vmul.f32 %v440, %v499
  %v506 = vmul.f32 %v444, %v498
  %v507 = vmul.f32 %v444, %v499
  %v508 = vmul.f32 %v448, %v498
  %v509 = vmul.f32 %v448, %v499
  %v510 = vmul.f32 %v452, %v498
  %v511 = vmul.f32 %v452, %v499
  %v512 = vmul.f32 %v456, %v498
  %v513 = vmul.f32 %v456, %v499
  %v514 = vmul.f32 %v460, %v498
  %v515 = vmul.f32 %v460, %v499
  %v516 = vmul.f32 %v464, %v498
  %v517 = vmul.f32 %v464, %v499
  %v518 = vmul.f32 %v468, %v498
  %v519 = vmul.f32 %v468, %v499
  %v520 = vmul.f32 %v472, %v498
  %v521 = vmul.f32 %v472, %v499
  %v522 = vmul.f32 %v476, %v498
  %v523 = vmul.f32 %v476, %v499
  %v524 = vmul.f32 %v480, %v498
  %v525 = vmul.f32 %v480, %v499
  %v526 = vmul.f32 %v484, %v498
  %v527 = vmul.f32 %v484, %v499
  %v528 = vmul.f32 %v488, %v498
  %v529 = vmul.f32 %v488, %v499
  %v530 = vmul.f32 %v492, %v498
  %v531 = vmul.f32 %v492, %v499
  %v532 = vadd.f32 %v398, %v500
  %v533 = vadd.f32 %v399, %v501
  %v534 = vadd.f32 %v400, %v502
  %v535 = vadd.f32 %v401, %v503
  %v536 = vadd.f32 %v402, %v504
  %v537 = vadd.f32 %v403, %v505
  %v538 = vadd.f32 %v404, %v506
  %v539 = vadd.f32 %v405, %v507
  %v540 = vadd.f32 %v406, %v508
  %v541 = vadd.f32 %v407, %v509
  %v542 = vadd.f32 %v408, %v510
  %v543 = vadd.f32 %v409, %v511
  %v544 = vadd.f32 %v410, %v512
  %v545 = vadd.f32 %v411, %v513
  %v546 = vadd.f32 %v412, %v514
  %v547 = vadd.f32 %v413, %v515
  %v548 = vadd.f32 %v414, %v516
  %v549 = vadd.f32 %v415, %v517
  %v550 = vadd.f32 %v416, %v518
  %v551 = vadd.f32 %v417, %v519
  %v552 = vadd.f32 %v418, %v520
  %v553 = vadd.f32 %v419, %v521
  %v554 = vadd.f32 %v420, %v522
  %v555 = vadd.f32 %v421, %v523
  %v556 = vadd.f32 %v422, %v524
  %v557 = vadd.f32 %v423, %v525
  %v558 = vadd.f32 %v424, %v526
  %v559 = vadd.f32 %v425, %v527
  %v560 = vadd.f32 %v426, %v528
  %v561 = vadd.f32 %v427, %v529
  %v562 = vadd.f32 %v428, %v530
  %v563 = vadd.f32 %v429, %v531
  %v564 = vld [vmem:[%s2] sm:$0xff]
  %v565 = vld [vmem:[%s2 + $0x8] sm:$0xff]
  %v566 = vld [vmem:[%s2 + $0x10] sm:$0xff]
  %v567 = vld [vmem:[%s2 + $0x18] sm:$0xff]
  %v568 = vld [vmem:[%s2 + $0x20] sm:$0xff]
  %v569 = vld [vmem:[%s2 + $0x28] sm:$0xff]
  %v570 = vld [vmem:[%s2 + $0x30] sm:$0xff]
  %v571 = vld [vmem:[%s2 + $0x38] sm:$0xff]
  %v572 = vld [vmem:[%s2 + $0x40] sm:$0xff]
  %v573 = vld [vmem:[%s2 + $0x48] sm:$0xff]
  %v574 = vld [vmem:[%s2 + $0x50] sm:$0xff]
  %v575 = vld [vmem:[%s2 + $0x58] sm:$0xff]
  %v576 = vld [vmem:[%s2 + $0x60] sm:$0xff]
  %v577 = vld [vmem:[%s2 + $0x68] sm:$0xff]
  %v578 = vld [vmem:[%s2 + $0x70] sm:$0xff]
  %v579 = vld [vmem:[%s2 + $0x78] sm:$0xff]
  %581 = vset.pattern.permute.xlu0 0
  %582 = vperm.xlu0 %581, %v564
  %v583 = vpop.permute.xlu0 %582
  %586 = vset.pattern.permute.xlu0 0
  %587 = vperm.xlu0 %586, %v565
  %v588 = vpop.permute.xlu0 %587
  %591 = vset.pattern.permute.xlu0 0
  %592 = vperm.xlu0 %591, %v566
  %v593 = vpop.permute.xlu0 %592
  %596 = vset.pattern.permute.xlu0 0
  %597 = vperm.xlu0 %596, %v567
  %v598 = vpop.permute.xlu0 %597
  %601 = vset.pattern.permute.xlu0 0
  %602 = vperm.xlu0 %601, %v568
  %v603 = vpop.permute.xlu0 %602
  %606 = vset.pattern.permute.xlu0 0
  %607 = vperm.xlu0 %606, %v569
  %v608 = vpop.permute.xlu0 %607
  %611 = vset.pattern.permute.xlu0 0
  %612 = vperm.xlu0 %611, %v570
  %v613 = vpop.permute.xlu0 %612
  %616 = vset.pattern.permute.xlu0 0
  %617 = vperm.xlu0 %616, %v571
  %v618 = vpop.permute.xlu0 %617
  %621 = vset.pattern.permute.xlu0 0
  %622 = vperm.xlu0 %621, %v572
  %v623 = vpop.permute.xlu0 %622
  %626 = vset.pattern.permute.xlu0 0
  %627 = vperm.xlu0 %626, %v573
  %v628 = vpop.permute.xlu0 %627
  %631 = vset.pattern.permute.xlu0 0
  %632 = vperm.xlu0 %631, %v574
  %v633 = vpop.permute.xlu0 %632
  %636 = vset.pattern.permute.xlu0 0
  %637 = vperm.xlu0 %636, %v575
  %v638 = vpop.permute.xlu0 %637
  %641 = vset.pattern.permute.xlu0 0
  %642 = vperm.xlu0 %641, %v576
  %v643 = vpop.permute.xlu0 %642
  %646 = vset.pattern.permute.xlu0 0
  %647 = vperm.xlu0 %646, %v577
  %v648 = vpop.permute.xlu0 %647
  %651 = vset.pattern.permute.xlu0 0
  %652 = vperm.xlu0 %651, %v578
  %v653 = vpop.permute.xlu0 %652
  %656 = vset.pattern.permute.xlu0 0
  %657 = vperm.xlu0 %656, %v579
  %v658 = vpop.permute.xlu0 %657
  %v660 = vadd.f32 %v532, %v583
  %v661 = vadd.f32 %v533, %v583
  %v662 = vadd.f32 %v534, %v588
  %v663 = vadd.f32 %v535, %v588
  %v664 = vadd.f32 %v536, %v593
  %v665 = vadd.f32 %v537, %v593
  %v666 = vadd.f32 %v538, %v598
  %v667 = vadd.f32 %v539, %v598
  %v668 = vadd.f32 %v540, %v603
  %v669 = vadd.f32 %v541, %v603
  %v670 = vadd.f32 %v542, %v608
  %v671 = vadd.f32 %v543, %v608
  %v672 = vadd.f32 %v544, %v613
  %v673 = vadd.f32 %v545, %v613
  %v674 = vadd.f32 %v546, %v618
  %v675 = vadd.f32 %v547, %v618
  %v676 = vadd.f32 %v548, %v623
  %v677 = vadd.f32 %v549, %v623
  %v678 = vadd.f32 %v550, %v628
  %v679 = vadd.f32 %v551, %v628
  %v680 = vadd.f32 %v552, %v633
  %v681 = vadd.f32 %v553, %v633
  %v682 = vadd.f32 %v554, %v638
  %v683 = vadd.f32 %v555, %v638
  %v684 = vadd.f32 %v556, %v643
  %v685 = vadd.f32 %v557, %v643
  %v686 = vadd.f32 %v558, %v648
  %v687 = vadd.f32 %v559, %v648
  %v688 = vadd.f32 %v560, %v653
  %v689 = vadd.f32 %v561, %v653
  %v690 = vadd.f32 %v562, %v658
  %v691 = vadd.f32 %v563, %v658
  %v692 = vmax.f32 %v660, 0.0
  %v693 = vmax.f32 %v661, 0.0
  %v694 = vmax.f32 %v662, 0.0
  %v695 = vmax.f32 %v663, 0.0
  %v696 = vmax.f32 %v664, 0.0
  %v697 = vmax.f32 %v665, 0.0
  %v698 = vmax.f32 %v666, 0.0
  %v699 = vmax.f32 %v667, 0.0
  %v700 = vmax.f32 %v668, 0.0
  %v701 = vmax.f32 %v669, 0.0
  %v702 = vmax.f32 %v670, 0.0
  %v703 = vmax.f32 %v671, 0.0
  %v704 = vmax.f32 %v672, 0.0
  %v705 = vmax.f32 %v673, 0.0
  %v706 = vmax.f32 %v674, 0.0
  %v707 = vmax.f32 %v675, 0.0
  %v708 = vmax.f32 %v676, 0.0
  %v709 = vmax.f32 %v677, 0.0
  %v710 = vmax.f32 %v678, 0.0
  %v711 = vmax.f32 %v679, 0.0
  %v712 = vmax.f32 %v680, 0.0
  %v713 = vmax.f32 %v681, 0.0
  %v714 = vmax.f32 %v682, 0.0
  %v715 = vmax.f32 %v683, 0.0
  %v716 = vmax.f32 %v684, 0.0
  %v717 = vmax.f32 %v685, 0.0
  %v718 = vmax.f32 %v686, 0.0
  %v719 = vmax.f32 %v687, 0.0
  %v720 = vmax.f32 %v688, 0.0
  %v721 = vmax.f32 %v689, 0.0
  %v722 = vmax.f32 %v690, 0.0
  %v723 = vmax.f32 %v691, 0.0
  %v724 = vld [vmem:[%s3] sm:$0xf]
  %v725 = vld [vmem:[%s3 + $0x4] sm:$0xf]
  %v726 = vld [vmem:[%s3 + $0x8] sm:$0xf]
  %v727 = vld [vmem:[%s3 + $0xc] sm:$0xf]
  %v728 = vld [vmem:[%s3 + $0x10] sm:$0xf]
  %v729 = vld [vmem:[%s3 + $0x14] sm:$0xf]
  %v730 = vld [vmem:[%s3 + $0x18] sm:$0xf]
  %v731 = vld [vmem:[%s3 + $0x1c] sm:$0xf]
  %v732 = vld [vmem:[%s3 + $0x20] sm:$0xf]
  %v733 = vld [vmem:[%s3 + $0x24] sm:$0xf]
  %v734 = vld [vmem:[%s3 + $0x28] sm:$0xf]
  %v735 = vld [vmem:[%s3 + $0x2c] sm:$0xf]
  %v736 = vld [vmem:[%s3 + $0x30] sm:$0xf]
  %v737 = vld [vmem:[%s3 + $0x34] sm:$0xf]
  %v738 = vld [vmem:[%s3 + $0x38] sm:$0xf]
  %v739 = vld [vmem:[%s3 + $0x3c] sm:$0xf]
  %v740 = vpack.c.bf16 %v694, %v692
  %v741 = vpack.c.bf16 %v695, %v693
  %v742 = vpack.c.bf16 %v698, %v696
  %v743 = vpack.c.bf16 %v699, %v697
  %v744 = vpack.c.bf16 %v702, %v700
  %v745 = vpack.c.bf16 %v703, %v701
  %v746 = vpack.c.bf16 %v706, %v704
  %v747 = vpack.c.bf16 %v707, %v705
  %v748 = vpack.c.bf16 %v710, %v708
  %v749 = vpack.c.bf16 %v711, %v709
  %v750 = vpack.c.bf16 %v714, %v712
  %v751 = vpack.c.bf16 %v715, %v713
  %v752 = vpack.c.bf16 %v718, %v716
  %v753 = vpack.c.bf16 %v719, %v717
  %v754 = vpack.c.bf16 %v722, %v720
  %v755 = vpack.c.bf16 %v723, %v721
  %v756 = vld [vmem:[%s4] sm:$0xff]
  %v757 = vld [vmem:[%s4 + $0x8] sm:$0xff]
  %v758 = vld [vmem:[%s4 + $0x10] sm:$0xff]
  %v759 = vld [vmem:[%s4 + $0x18] sm:$0xff]
  %v760 = vld [vmem:[%s4 + $0x20] sm:$0xff]
  %v761 = vld [vmem:[%s4 + $0x28] sm:$0xff]
  %v762 = vld [vmem:[%s4 + $0x30] sm:$0xff]
  %v763 = vld [vmem:[%s4 + $0x38] sm:$0xff]
  %v764 = vld [vmem:[%s4 + $0x40] sm:$0xff]
  %v765 = vld [vmem:[%s4 + $0x48] sm:$0xff]
  %v766 = vld [vmem:[%s4 + $0x50] sm:$0xff]
  %v767 = vld [vmem:[%s4 + $0x58] sm:$0xff]
  %v768 = vld [vmem:[%s4 + $0x60] sm:$0xff]
  %v769 = vld [vmem:[%s4 + $0x68] sm:$0xff]
  %v770 = vld [vmem:[%s4 + $0x70] sm:$0xff]
  %v771 = vld [vmem:[%s4 + $0x78] sm:$0xff]
  %773 = vset.pattern.permute.xlu0 0
  %774 = vperm.xlu0 %773, %v756
  %v775 = vpop.permute.xlu0 %774
  %778 = vset.pattern.permute.xlu0 0
  %779 = vperm.xlu0 %778, %v757
  %v780 = vpop.permute.xlu0 %779
  %783 = vset.pattern.permute.xlu0 0
  %784 = vperm.xlu0 %783, %v758
  %v785 = vpop.permute.xlu0 %784
  %788 = vset.pattern.permute.xlu0 0
  %789 = vperm.xlu0 %788, %v759
  %v790 = vpop.permute.xlu0 %789
  %793 = vset.pattern.permute.xlu0 0
  %794 = vperm.xlu0 %793, %v760
  %v795 = vpop.permute.xlu0 %794
  %798 = vset.pattern.permute.xlu0 0
  %799 = vperm.xlu0 %798, %v761
  %v800 = vpop.permute.xlu0 %799
  %803 = vset.pattern.permute.xlu0 0
  %804 = vperm.xlu0 %803, %v762
  %v805 = vpop.permute.xlu0 %804
  %808 = vset.pattern.permute.xlu0 0
  %809 = vperm.xlu0 %808, %v763
  %v810 = vpop.permute.xlu0 %809
  %813 = vset.pattern.permute.xlu0 0
  %814 = vperm.xlu0 %813, %v764
  %v815 = vpop.permute.xlu0 %814
  %818 = vset.pattern.permute.xlu0 0
  %819 = vperm.xlu0 %818, %v765
  %v820 = vpop.permute.xlu0 %819
  %823 = vset.pattern.permute.xlu0 0
  %824 = vperm.xlu0 %823, %v766
  %v825 = vpop.permute.xlu0 %824
  %828 = vset.pattern.permute.xlu0 0
  %829 = vperm.xlu0 %828, %v767
  %v830 = vpop.permute.xlu0 %829
  %833 = vset.pattern.permute.xlu0 0
  %834 = vperm.xlu0 %833, %v768
  %v835 = vpop.permute.xlu0 %834
  %838 = vset.pattern.permute.xlu0 0
  %839 = vperm.xlu0 %838, %v769
  %v840 = vpop.permute.xlu0 %839
  %843 = vset.pattern.permute.xlu0 0
  %844 = vperm.xlu0 %843, %v770
  %v845 = vpop.permute.xlu0 %844
  %848 = vset.pattern.permute.xlu0 0
  %849 = vperm.xlu0 %848, %v771
  %v850 = vpop.permute.xlu0 %849
  %v868 = vunpack.c.l.b16 %v724
  %v869 = vunpack.c.l.b16 %v725
  %v870 = vunpack.c.l.b16 %v726
  %v871 = vunpack.c.l.b16 %v727
  %v872 = vunpack.c.l.b16 %v728
  %v873 = vunpack.c.l.b16 %v729
  %v874 = vunpack.c.l.b16 %v730
  %v875 = vunpack.c.l.b16 %v731
  %v876 = vunpack.c.l.b16 %v732
  %v877 = vunpack.c.l.b16 %v733
  %v878 = vunpack.c.l.b16 %v734
  %v879 = vunpack.c.l.b16 %v735
  %v880 = vunpack.c.l.b16 %v736
  %v881 = vunpack.c.l.b16 %v737
  %v882 = vunpack.c.l.b16 %v738
  %v883 = vunpack.c.l.b16 %v739
  %v884 = vpack.c.b16 %v869, %v868
  %v885 = vpack.c.b16 %v871, %v870
  %v886 = vpack.c.b16 %v873, %v872
  %v887 = vpack.c.b16 %v875, %v874
  %v888 = vpack.c.b16 %v877, %v876
  %v889 = vpack.c.b16 %v879, %v878
  %v890 = vpack.c.b16 %v881, %v880
  %v891 = vpack.c.b16 %v883, %v882
  %900 = vmatpush.bf16.msra.mxu0 %v754
  %901 = vmatpush.bf16.msra.mxu0 %v752
  %902 = vmatpush.bf16.msra.mxu0 %v750
  %903 = vmatpush.bf16.msra.mxu0 %v748
  %904 = vmatpush.bf16.msra.mxu0 %v746
  %905 = vmatpush.bf16.msra.mxu0 %v744
  %906 = vmatpush.bf16.msra.mxu0 %v742
  %907 = vmatpush.bf16.msra.mxu0 %v740
  %908 = vmatmul.bf16.gmra.mxu0 %v884
  %v909 = vpop.f32.mrf.mxu0
  %v910 = vadd.f32 %v775, %v909
  %v911 = vpop.f32.mrf.mxu0
  %v912 = vadd.f32 %v780, %v911
  %913 = vmatmul.bf16.gmra.mxu0 %v885
  %v914 = vpop.f32.mrf.mxu0
  %v915 = vadd.f32 %v785, %v914
  %v916 = vpop.f32.mrf.mxu0
  %v917 = vadd.f32 %v790, %v916
  %918 = vmatmul.bf16.gmra.mxu0 %v886
  %v919 = vpop.f32.mrf.mxu0
  %v920 = vadd.f32 %v795, %v919
  %v921 = vpop.f32.mrf.mxu0
  %v922 = vadd.f32 %v800, %v921
  %923 = vmatmul.bf16.gmra.mxu0 %v887
  %v924 = vpop.f32.mrf.mxu0
  %v925 = vadd.f32 %v805, %v924
  %v926 = vpop.f32.mrf.mxu0
  %v927 = vadd.f32 %v810, %v926
  %928 = vmatmul.bf16.gmra.mxu0 %v888
  %v929 = vpop.f32.mrf.mxu0
  %v930 = vadd.f32 %v815, %v929
  %v931 = vpop.f32.mrf.mxu0
  %v932 = vadd.f32 %v820, %v931
  %933 = vmatmul.bf16.gmra.mxu0 %v889
  %v934 = vpop.f32.mrf.mxu0
  %v935 = vadd.f32 %v825, %v934
  %v936 = vpop.f32.mrf.mxu0
  %v937 = vadd.f32 %v830, %v936
  %938 = vmatmul.bf16.gmra.mxu0 %v890
  %v939 = vpop.f32.mrf.mxu0
  %v940 = vadd.f32 %v835, %v939
  %v941 = vpop.f32.mrf.mxu0
  %v942 = vadd.f32 %v840, %v941
  %943 = vmatmul.bf16.gmra.mxu0 %v891
  %v944 = vpop.f32.mrf.mxu0
  %v945 = vadd.f32 %v845, %v944
  %v946 = vpop.f32.mrf.mxu0
  %v947 = vadd.f32 %v850, %v946
  %948 = vdwg.mxu0
  %949 = vmatpush.bf16.msra.mxu0 %v755
  %950 = vmatpush.bf16.msra.mxu0 %v753
  %951 = vmatpush.bf16.msra.mxu0 %v751
  %952 = vmatpush.bf16.msra.mxu0 %v749
  %953 = vmatpush.bf16.msra.mxu0 %v747
  %954 = vmatpush.bf16.msra.mxu0 %v745
  %955 = vmatpush.bf16.msra.mxu0 %v743
  %956 = vmatpush.bf16.msra.mxu0 %v741
  %957 = vmatmul.bf16.gmra.mxu0 %v884
  %v958 = vpop.f32.mrf.mxu0
  %v959 = vadd.f32 %v775, %v958
  %v960 = vpop.f32.mrf.mxu0
  %v961 = vadd.f32 %v780, %v960
  %962 = vmatmul.bf16.gmra.mxu0 %v885
  %v963 = vpop.f32.mrf.mxu0
  %v964 = vadd.f32 %v785, %v963
  %v965 = vpop.f32.mrf.mxu0
  %v966 = vadd.f32 %v790, %v965
  %967 = vmatmul.bf16.gmra.mxu0 %v886
  %v968 = vpop.f32.mrf.mxu0
  %v969 = vadd.f32 %v795, %v968
  %v970 = vpop.f32.mrf.mxu0
  %v971 = vadd.f32 %v800, %v970
  %972 = vmatmul.bf16.gmra.mxu0 %v887
  %v973 = vpop.f32.mrf.mxu0
  %v974 = vadd.f32 %v805, %v973
  %v975 = vpop.f32.mrf.mxu0
  %v976 = vadd.f32 %v810, %v975
  %977 = vmatmul.bf16.gmra.mxu0 %v888
  %v978 = vpop.f32.mrf.mxu0
  %v979 = vadd.f32 %v815, %v978
  %v980 = vpop.f32.mrf.mxu0
  %v981 = vadd.f32 %v820, %v980
  %982 = vmatmul.bf16.gmra.mxu0 %v889
  %v983 = vpop.f32.mrf.mxu0
  %v984 = vadd.f32 %v825, %v983
  %v985 = vpop.f32.mrf.mxu0
  %v986 = vadd.f32 %v830, %v985
  %987 = vmatmul.bf16.gmra.mxu0 %v890
  %v988 = vpop.f32.mrf.mxu0
  %v989 = vadd.f32 %v835, %v988
  %v990 = vpop.f32.mrf.mxu0
  %v991 = vadd.f32 %v840, %v990
  %992 = vmatmul.bf16.gmra.mxu0 %v891
  %v993 = vpop.f32.mrf.mxu0
  %v994 = vadd.f32 %v845, %v993
  %v995 = vpop.f32.mrf.mxu0
  %v996 = vadd.f32 %v850, %v995
  %997 = vdwg.mxu0
  %v998 = vmax.f32 %v910, 0.0
  %v999 = vmax.f32 %v959, 0.0
  %v1000 = vmax.f32 %v912, 0.0
  %v1001 = vmax.f32 %v961, 0.0
  %v1002 = vmax.f32 %v915, 0.0
  %v1003 = vmax.f32 %v964, 0.0
  %v1004 = vmax.f32 %v917, 0.0
  %v1005 = vmax.f32 %v966, 0.0
  %v1006 = vmax.f32 %v920, 0.0
  %v1007 = vmax.f32 %v969, 0.0
  %v1008 = vmax.f32 %v922, 0.0
  %v1009 = vmax.f32 %v971, 0.0
  %v1010 = vmax.f32 %v925, 0.0
  %v1011 = vmax.f32 %v974, 0.0
  %v1012 = vmax.f32 %v927, 0.0
  %v1013 = vmax.f32 %v976, 0.0
  %v1014 = vmax.f32 %v930, 0.0
  %v1015 = vmax.f32 %v979, 0.0
  %v1016 = vmax.f32 %v932, 0.0
  %v1017 = vmax.f32 %v981, 0.0
  %v1018 = vmax.f32 %v935, 0.0
  %v1019 = vmax.f32 %v984, 0.0
  %v1020 = vmax.f32 %v937, 0.0
  %v1021 = vmax.f32 %v986, 0.0
  %v1022 = vmax.f32 %v940, 0.0
  %v1023 = vmax.f32 %v989, 0.0
  %v1024 = vmax.f32 %v942, 0.0
  %v1025 = vmax.f32 %v991, 0.0
  %v1026 = vmax.f32 %v945, 0.0
  %v1027 = vmax.f32 %v994, 0.0
  %v1028 = vmax.f32 %v947, 0.0
  %v1029 = vmax.f32 %v996, 0.0
  %v1030 = vld [vmem:[%s5] sm:$0x1]
  %v1031 = vpack.c.bf16 %v1000, %v998
  %v1032 = vpack.c.bf16 %v1001, %v999
  %v1033 = vpack.c.bf16 %v1004, %v1002
  %v1034 = vpack.c.bf16 %v1005, %v1003
  %v1035 = vpack.c.bf16 %v1008, %v1006
  %v1036 = vpack.c.bf16 %v1009, %v1007
  %v1037 = vpack.c.bf16 %v1012, %v1010
  %v1038 = vpack.c.bf16 %v1013, %v1011
  %v1039 = vpack.c.bf16 %v1016, %v1014
  %v1040 = vpack.c.bf16 %v1017, %v1015
  %v1041 = vpack.c.bf16 %v1020, %v1018
  %v1042 = vpack.c.bf16 %v1021, %v1019
  %v1043 = vpack.c.bf16 %v1024, %v1022
  %v1044 = vpack.c.bf16 %v1025, %v1023
  %v1045 = vpack.c.bf16 %v1028, %v1026
  %v1046 = vpack.c.bf16 %v1029, %v1027
  %v1047 = vld [vmem:[%s6] sm:$0x3]
  %1049 = vset.pattern.permute.xlu0 0
  %1050 = vperm.xlu0 %1049, %v1047
  %v1051 = vpop.permute.xlu0 %1050
  %1053 = vmatpush.bf16.msra.mxu0 %v1045
  %1054 = vmatpush.bf16.msra.mxu0 %v1043
  %1055 = vmatpush.bf16.msra.mxu0 %v1041
  %1056 = vmatpush.bf16.msra.mxu0 %v1039
  %1057 = vmatpush.bf16.msra.mxu0 %v1037
  %1058 = vmatpush.bf16.msra.mxu0 %v1035
  %1059 = vmatpush.bf16.msra.mxu0 %v1033
  %1060 = vmatpush.bf16.msra.mxu0 %v1031
  %1061 = vmatmul.bf16.gmra.mxu0 %v1030
  %v1062 = vpop.f32.mrf.mxu0
  %v1063 = vadd.f32 %v1051, %v1062
  %v1064 = vpop.f32.mrf.mxu0
  %1065 = vdwg.mxu0
  %1066 = vmatpush.bf16.msra.mxu0 %v1046
  %1067 = vmatpush.bf16.msra.mxu0 %v1044
  %1068 = vmatpush.bf16.msra.mxu0 %v1042
  %1069 = vmatpush.bf16.msra.mxu0 %v1040
  %1070 = vmatpush.bf16.msra.mxu0 %v1038
  %1071 = vmatpush.bf16.msra.mxu0 %v1036
  %1072 = vmatpush.bf16.msra.mxu0 %v1034
  %1073 = vmatpush.bf16.msra.mxu0 %v1032
  %1074 = vmatmul.bf16.gmra.mxu0 %v1030
  %v1075 = vpop.f32.mrf.mxu0
  %v1076 = vadd.f32 %v1051, %v1075
  %v1077 = vpop.f32.mrf.mxu0
  %1078 = vdwg.mxu0
  %v1081 = vrot.slane %v1076, 6
  %vm1082 = vcmask 1041408
  %v1083 = vsel %vm1082, %v1063, %v1081
  %1085 = vst [vmem:[%s7] sm:$0xf] %v1083
  // Predicated region
  $region30: #{net_forward.1} parent=0 // pred_check
    _
  $region31: #{net_forward.1} parent=0 // pred_check_branch
    %1087 = sbr.rel (0) target = $region33
  $region32: #{net_forward.1} parent=0 // pred_region
    _
  $region33: #{net_forward.1} parent=0 // pred_fallthru
    _
  // Predicated region
  $region34: #{net_forward.1} parent=0 // pred_check
    _
  $region35: #{net_forward.1} parent=0 // pred_check_branch
    %1089 = sbr.rel (0) target = $region37
  $region36: #{net_forward.1} parent=0 // pred_region
    _
  $region37: #{net_forward.1} parent=0 // pred_fallthru
    _

</llo_original>
